<compile_context>
chip_gen: v7x
topology: tpu7x:2x2x1
jax: 0.10.0
libtpu: 0.0.40
codegen_flags: <defaults>
</compile_context>

<pallas_src>
import functools

import jax
import jax.numpy as jnp
from jax.experimental import pallas as pl
from jax.experimental.pallas import tpu as pltpu


_LANE = 128
_SUBLANE = 8
_MAX_BATCH_TILE = 32768


def _round_up(v, m):
    return (v + m - 1) // m * m


def _tile_budget():
    """(per-buffer input-tile byte target, vmem_limit cap) by TPU generation."""
    try:
        info = pltpu.get_tpu_info()
        cap = getattr(info, "vmem_capacity_bytes", None)
    except Exception:
        cap = None
    if cap is not None and cap >= (100 << 20):      # v5e / v6e: 128 MiB VMEM
        return 8 << 20, 96 << 20
    return 4 << 20, 44 << 20                         # v7x (64 MiB / TC) or unknown


def _stacked_identity(num_fields, embed_dim):
    """S (F*D, D) with S[f*D + d, d'] = (d == d'), built from iota/eq only."""
    fd = num_fields * embed_dim
    row = jax.lax.broadcasted_iota(jnp.int32, (fd, embed_dim), 0)
    col = jax.lax.broadcasted_iota(jnp.int32, (fd, embed_dim), 1)
    acc = None
    for f in range(num_fields):
        m = row == (col + f * embed_dim)
        acc = m if acc is None else (acc | m)
    return acc.astype(jnp.float32)


def _fm_kernel(x_ref, o_ref, *, num_fields, embed_dim, reduce_sum):
    """x_ref: (tb, F*D) lane-dense block.
    o_ref: (1, tb) if reduce_sum else (tb, D)."""
    F, D = num_fields, embed_dim
    FD = F * D

    x2 = x_ref[...].astype(jnp.float32)                       # (tb, FD)
    S = _stacked_identity(F, D)                                # (FD, D), tiny
    # Field sum on the MXU: s[b, d] = sum_f x[b, f, d].
    s = jnp.dot(x2, S, preferred_element_type=jnp.float32)     # (tb, D)

    if reduce_sum:
        # Row reductions produced directly in lane-major (1, tb) layout:
        #   sum_d s^2  and  sum_{f,d} x^2  via ones-vector NT contractions.
        nt = (((1,), (1,)), ((), ()))
        r_sq = jax.lax.dot_general(jnp.ones((1, D), jnp.float32), s * s,
                                   nt, preferred_element_type=jnp.float32)
        r_ssq = jax.lax.dot_general(jnp.ones((1, FD), jnp.float32), x2 * x2,
                                    nt, preferred_element_type=jnp.float32)
        o_ref[...] = (0.5 * (r_sq - r_ssq)).astype(o_ref.dtype)   # (1, tb)
    else:
        ss = jnp.dot(x2 * x2, S, preferred_element_type=jnp.float32)  # (tb, D)
        o_ref[...] = (0.5 * (s * s - ss)).astype(o_ref.dtype)         # (tb, D)


def factorization_machine(x, *, reduce_sum=True, batch_tile=None):
    """Pallas TPU FactorizationMachine forward.

    x: (B, F, D) float array.
    Returns (B, 1) if reduce_sum else (B, D), same dtype as x.
    """
    B, F, D = x.shape
    FD = F * D
    itemsize = jnp.dtype(x.dtype).itemsize

    # Lane-dense 2-D view: one contiguous F*D-wide row per example.
    x2 = x.reshape(B, FD)

    fd_pad = _round_up(FD, _LANE)
    d_pad = _round_up(D, _LANE)
    row_bytes = fd_pad * itemsize
    b_pad = _round_up(B, _SUBLANE)

    target_bytes, vmem_cap = _tile_budget()

    if batch_tile is None:
        tb = max(_SUBLANE, target_bytes // row_bytes)
        tb = min(tb, _MAX_BATCH_TILE)
        # v7x megacore: guarantee >= 2 grid steps for large batches so the
        # "parallel" grid axis can shard across both TensorCores.
        if B > 2 * _LANE:
            tb = min(tb, _round_up(pl.cdiv(B, 2), _LANE))
    else:
        tb = max(_SUBLANE, int(batch_tile))
    tb = min(_round_up(tb, _SUBLANE), b_pad)

    if reduce_sum and tb < b_pad and tb % _LANE != 0:
        # Multi-tile lane-dense (1, tb) output blocks need tb % 128 == 0;
        # if that overshoots the batch we collapse back to a single tile.
        tb = min(_round_up(tb, _LANE), b_pad)

    num_tiles = pl.cdiv(B, tb)          # ragged batches: boundary block padded
    grid = (num_tiles,)

    # Explicit VMEM budget: double-buffered input, f32 tile temporaries
    # (cast + square), (tb, D)-column f32 temporaries, double-buffered output.
    in_tile = tb * fd_pad * itemsize
    f32_tile = tb * fd_pad * 4
    dcol_tile = tb * d_pad * 4
    if reduce_sum:
        out_tile = _SUBLANE * _round_up(tb, _LANE) * itemsize
    else:
        out_tile = tb * d_pad * itemsize
    vmem_est = 2 * in_tile + 2 * f32_tile + 3 * dcol_tile + 2 * out_tile + (4 << 20)
    vmem_limit = int(min(max(vmem_est, 16 << 20), vmem_cap))

    in_specs = [pl.BlockSpec((tb, FD), lambda i: (i, 0))]
    if reduce_sum:
        T = num_tiles * tb
        out_shape = jax.ShapeDtypeStruct((1, T), x.dtype)     # lane-dense result
        out_specs = pl.BlockSpec((1, tb), lambda i: (0, i))
    else:
        out_shape = jax.ShapeDtypeStruct((B, D), x.dtype)
        out_specs = pl.BlockSpec((tb, D), lambda i: (i, 0))

    kernel = functools.partial(_fm_kernel, num_fields=F, embed_dim=D,
                               reduce_sum=reduce_sum)

    out = pl.pallas_call(
        kernel,
        out_shape=out_shape,
        grid_spec=pltpu.PrefetchScalarGridSpec(
            num_scalar_prefetch=0,
            grid=grid,
            in_specs=in_specs,
            out_specs=out_specs,
        ),
        compiler_params=pltpu.CompilerParams(
            dimension_semantics=("parallel",),   # shard batch tiles across TCs (v7x)
            vmem_limit_bytes=vmem_limit,
        ),
    )(x2)

    if reduce_sum:
        # Drop padded tail columns; keep the PyTorch-parity (B, 1) shape.
        return out[0, :B][:, None]
    return out


def _fm_reference(x, reduce_sum=True):
    square_of_sum = jnp.sum(x, axis=1) ** 2
    sum_of_square = jnp.sum(x ** 2, axis=1)
    ix = square_of_sum - sum_of_square
    if reduce_sum:
        ix = jnp.sum(ix, axis=1, keepdims=True)
    return 0.5 * ix


if __name__ == "__main__":
    key = jax.random.PRNGKey(0)
    B, F, D = 8, 4, 32
    x = jax.random.normal(key, (B, F, D), dtype=jnp.float32)

    # reduce_sum=True path
    out = jax.block_until_ready(factorization_machine(x, reduce_sum=True))
    ref = _fm_reference(x, reduce_sum=True)
    assert out.shape == (B, 1), out.shape
    assert jnp.allclose(out, ref, atol=2e-4, rtol=1e-5)

    # reduce_sum=False path
    out2 = jax.block_until_ready(factorization_machine(x, reduce_sum=False))
    ref2 = _fm_reference(x, reduce_sum=False)
    assert out2.shape == (B, D), out2.shape
    assert jnp.allclose(out2, ref2, atol=2e-4, rtol=1e-5)

    # ragged multi-tile grid, reduce_sum=True (lane-dense (1, T) output path)
    x3 = jax.random.normal(jax.random.PRNGKey(1), (300, F, D), dtype=jnp.float32)
    out3 = jax.block_until_ready(
        factorization_machine(x3, reduce_sum=True, batch_tile=128))
    ref3 = _fm_reference(x3, reduce_sum=True)
    assert out3.shape == (300, 1), out3.shape
    assert jnp.allclose(out3, ref3, atol=2e-4, rtol=1e-5)

    # ragged multi-tile grid, reduce_sum=False (output row clipping)
    x4 = jax.random.normal(jax.random.PRNGKey(2), (20, F, D), dtype=jnp.float32)
    out4 = jax.block_until_ready(
        factorization_machine(x4, reduce_sum=False, batch_tile=8))
    ref4 = _fm_reference(x4, reduce_sum=False)
    assert out4.shape == (20, D), out4.shape
    assert jnp.allclose(out4, ref4, atol=2e-4, rtol=1e-5)

    # F*D not a multiple of 128, ragged, multi-tile reduce
    x5 = jax.random.normal(jax.random.PRNGKey(3), (260, 3, 24), dtype=jnp.float32)
    out5 = jax.block_until_ready(
        factorization_machine(x5, reduce_sum=True, batch_tile=128))
    ref5 = _fm_reference(x5, reduce_sum=True)
    assert out5.shape == (260, 1), out5.shape
    assert jnp.allclose(out5, ref5, atol=2e-4, rtol=1e-5)

    # small ragged batch where the tile collapses back to a single full block
    x6 = jax.random.normal(jax.random.PRNGKey(4), (20, F, D), dtype=jnp.float32)
    out6 = jax.block_until_ready(
        factorization_machine(x6, reduce_sum=True, batch_tile=8))
    ref6 = _fm_reference(x6, reduce_sum=True)
    assert out6.shape == (20, 1), out6.shape
    assert jnp.allclose(out6, ref6, atol=2e-4, rtol=1e-5)

    print("KERNEL_OK")
</pallas_src>

<mosaic_0001>
module attributes {stable_mosaic.version = 11 : i64} {
  func.func @_fm_kernel(%arg0: i32, %arg1: memref<8x128xf32, #tpu.memory_space<vmem>>, %arg2: memref<1x8xf32, #tpu.memory_space<vmem>>) attributes {dimension_semantics = [#tpu.dimension_semantics<parallel>], iteration_bounds = array<i64: 1>, scalar_prefetch = 0 : i64, scratch_operands = 0 : i64, tpu.core_type = #tpu.core_type<tc>, window_params = [{transform_indices = @transform_0, window_bounds = array<i64: 8, 128>}, {transform_indices = @transform_1, window_bounds = array<i64: 1, 8>}]} {
    %c0 = arith.constant 0 : index
    %c0_0 = arith.constant 0 : index
    %0 = vector.load %arg1[%c0, %c0_0] : memref<8x128xf32, #tpu.memory_space<vmem>>, vector<8x128xf32>
    %1 = tpu.iota {dimensions = array<i32: 0>} : vector<128x32xi32>
    %2 = tpu.iota {dimensions = array<i32: 1>} : vector<128x32xi32>
    %c0_i32 = arith.constant 0 : i32
    %3 = vector.broadcast %c0_i32 : i32 to vector<128x32xi32>
    %4 = arith.addi %2, %3 : vector<128x32xi32>
    %5 = arith.cmpi eq, %1, %4 : vector<128x32xi32>
    %c32_i32 = arith.constant 32 : i32
    %6 = vector.broadcast %c32_i32 : i32 to vector<128x32xi32>
    %7 = arith.addi %2, %6 : vector<128x32xi32>
    %8 = arith.cmpi eq, %1, %7 : vector<128x32xi32>
    %9 = arith.ori %5, %8 : vector<128x32xi1>
    %c64_i32 = arith.constant 64 : i32
    %10 = vector.broadcast %c64_i32 : i32 to vector<128x32xi32>
    %11 = arith.addi %2, %10 : vector<128x32xi32>
    %12 = arith.cmpi eq, %1, %11 : vector<128x32xi32>
    %13 = arith.ori %9, %12 : vector<128x32xi1>
    %c96_i32 = arith.constant 96 : i32
    %14 = vector.broadcast %c96_i32 : i32 to vector<128x32xi32>
    %15 = arith.addi %2, %14 : vector<128x32xi32>
    %16 = arith.cmpi eq, %1, %15 : vector<128x32xi32>
    %17 = arith.ori %13, %16 : vector<128x32xi1>
    %18 = arith.extui %17 : vector<128x32xi1> to vector<128x32xi32>
    %19 = arith.sitofp %18 : vector<128x32xi32> to vector<128x32xf32>
    %cst = arith.constant dense<0.000000e+00> : vector<8x32xf32>
    %20 = tpu.matmul %0, %19, %cst {dimension_numbers = #tpu.dot_dimension_numbers<[1], [0], [0], [1], [0, 0, 1, 1], [], []>} : vector<8x128xf32>, vector<128x32xf32>, vector<8x32xf32> -> vector<8x32xf32>
    %cst_1 = arith.constant 1.000000e+00 : f32
    %21 = vector.broadcast %cst_1 : f32 to vector<1x32xf32>
    %22 = arith.mulf %20, %20 : vector<8x32xf32>
    %cst_2 = arith.constant dense<0.000000e+00> : vector<1x8xf32>
    %23 = tpu.matmul %21, %22, %cst_2 {dimension_numbers = #tpu.dot_dimension_numbers<[1], [1], [0], [0], [0, 0, 1, 0], [], []>} : vector<1x32xf32>, vector<8x32xf32>, vector<1x8xf32> -> vector<1x8xf32>
    %cst_3 = arith.constant 1.000000e+00 : f32
    %24 = vector.broadcast %cst_3 : f32 to vector<1x128xf32>
    %25 = arith.mulf %0, %0 : vector<8x128xf32>
    %cst_4 = arith.constant dense<0.000000e+00> : vector<1x8xf32>
    %26 = tpu.matmul %24, %25, %cst_4 {dimension_numbers = #tpu.dot_dimension_numbers<[1], [1], [0], [0], [0, 0, 1, 0], [], []>} : vector<1x128xf32>, vector<8x128xf32>, vector<1x8xf32> -> vector<1x8xf32>
    %27 = arith.subf %23, %26 : vector<1x8xf32>
    %cst_5 = arith.constant 5.000000e-01 : f32
    %28 = vector.broadcast %cst_5 : f32 to vector<1x8xf32>
    %29 = arith.mulf %28, %27 : vector<1x8xf32>
    %c0_6 = arith.constant 0 : index
    %c0_7 = arith.constant 0 : index
    %30 = vector.load %arg2[%c0_6, %c0_7] : memref<1x8xf32, #tpu.memory_space<vmem>>, vector<1x8xf32>
    tpu.vector_store %arg2[%c0_6, %c0_7], %29 {strides = array<i32>} : memref<1x8xf32, #tpu.memory_space<vmem>>, vector<1x8xf32>,
    return
  }
  func.func @transform_0(%arg0: i32) -> (i32, i32) {
    %c0_i32 = arith.constant 0 : i32
    %c0_i32_0 = arith.constant 0 : i32
    return %arg0, %c0_i32 : i32, i32
  }
  func.func @transform_1(%arg0: i32) -> (i32, i32) {
    %c0_i32 = arith.constant 0 : i32
    %c0_i32_0 = arith.constant 0 : i32
    return %c0_i32, %arg0 : i32, i32
  }
}

</mosaic_0001>

<llo_original>
// kernel: tpu_custom_call.1
$region0: #{tpu_custom_call.1}
  #allocation0 [shape = 'u32[]', space=smem, size = 0x4, offset = 0x4, fixed_abs, tag = 'smem constant byte address 0x4 - core index']
  #allocation1 [shape = 'u32[144,128]{1,0:T(1,128)}', space=vmem, size = 0x12000, scoped, tag = 'internal scratch']
  %s0 = inlined_call_operand.hbm [shape: f32[8,128], index: 0, kind: input, shape index: {}]
  %s1 = inlined_call_operand.hbm [shape: f32[1,8], index: 1, kind: output, shape index: {}]
  %s2 = sld [smem:[#allocation0]]
  $region18: #{tpu_custom_call.1} parent=0
    _
  %s4 = ssub.s32 1, %s2
  %s5 = scalar_select 0, %s4, %s2
  $region1: #{tpu_custom_call.1} parent=0
    #allocation2 [shape = 'u8[4096]{0}', space=vmem, size = 0x1000, scoped, tag = 'input window, operand 0, single buffered']
    #allocation3 [shape = 's32[1]{0}', space=sflag, size = 0x4, scoped, tag = 'scoped memory for tpu_custom_call.1']
    #allocation4 [shape = 's32[1]{0}', space=sflag, size = 0x4, scoped, tag = 'scoped memory for tpu_custom_call.1']
    #allocation5 [shape = 'u8[512]{0}', space=vmem, size = 0x400, scoped, tag = 'output window, operand 0, single buffered']
    %6 = vsyncpa [#allocation3], 0
    %7 = vsyncpa [#allocation4], 0
    // Predicated region
    $region2: #{tpu_custom_call.1} parent=1 // pred_check
      _
    $region3: #{tpu_custom_call.1} parent=1 // pred_check_branch
      %9 = sbr.rel (0) target = $region5
    $region4: #{tpu_custom_call.1} parent=1 // pred_region
      %s11 = ssub.s32 128, 128
      %12 = vsyncadd [#allocation3], %s11
      %s14 = sshll.u32 [#allocation2], 4
      %s15 = int_to_ptr.vmem [resolvable:$true] %s14
      %17 = dma.hbm_to_vmem [thread:$0]  %s0, 128, %s15, [#allocation3]
    $region5: #{tpu_custom_call.1} parent=1 // pred_fallthru
      _
    // Predicated region
    $region6: #{tpu_custom_call.1} parent=1 // pred_check
      _
    $region7: #{tpu_custom_call.1} parent=1 // pred_check_branch
      %19 = sbr.rel (0) target = $region9
    $region8: #{tpu_custom_call.1} parent=1 // pred_region
      %20 = dma.done [#allocation3], 128
    $region9: #{tpu_custom_call.1} parent=1 // pred_fallthru
      _
    %v21 = vld [vmem:[#allocation2] sm:$0xff]
    %v22 = vlaneseq
    %v23 = vshrl.u32 %v22, 7
    %v24 = vadd.s32 %v23, 8
    %v25 = vadd.s32 %v23, 16
    %v26 = vadd.s32 %v23, 24
    %v27 = vadd.s32 %v23, 32
    %v28 = vadd.s32 %v23, 40
    %v29 = vadd.s32 %v23, 48
    %v30 = vadd.s32 %v23, 56
    %v31 = vadd.s32 %v23, 64
    %v32 = vadd.s32 %v23, 72
    %v33 = vadd.s32 %v23, 80
    %v34 = vadd.s32 %v23, 88
    %v35 = vadd.s32 %v23, 96
    %v36 = vadd.s32 %v23, 104
    %v37 = vadd.s32 %v23, 112
    %v38 = vadd.s32 %v23, 120
    %v39 = vlaneseq
    %v40 = vand.u32 %v39, 127
    %vm41 = vcmp.eq.s32.totalorder %v23, %v40
    %vm42 = vcmp.eq.s32.totalorder %v24, %v40
    %vm43 = vcmp.eq.s32.totalorder %v25, %v40
    %vm44 = vcmp.eq.s32.totalorder %v26, %v40
    %vm45 = vcmp.eq.s32.totalorder %v27, %v40
    %vm46 = vcmp.eq.s32.totalorder %v28, %v40
    %vm47 = vcmp.eq.s32.totalorder %v29, %v40
    %vm48 = vcmp.eq.s32.totalorder %v30, %v40
    %vm49 = vcmp.eq.s32.totalorder %v31, %v40
    %vm50 = vcmp.eq.s32.totalorder %v32, %v40
    %vm51 = vcmp.eq.s32.totalorder %v33, %v40
    %vm52 = vcmp.eq.s32.totalorder %v34, %v40
    %vm53 = vcmp.eq.s32.totalorder %v35, %v40
    %vm54 = vcmp.eq.s32.totalorder %v36, %v40
    %vm55 = vcmp.eq.s32.totalorder %v37, %v40
    %vm56 = vcmp.eq.s32.totalorder %v38, %v40
    %v57 = vadd.s32 %v40, 32
    %vm58 = vcmp.eq.s32.totalorder %v23, %v57
    %vm59 = vcmp.eq.s32.totalorder %v24, %v57
    %vm60 = vcmp.eq.s32.totalorder %v25, %v57
    %vm61 = vcmp.eq.s32.totalorder %v26, %v57
    %vm62 = vcmp.eq.s32.totalorder %v27, %v57
    %vm63 = vcmp.eq.s32.totalorder %v28, %v57
    %vm64 = vcmp.eq.s32.totalorder %v29, %v57
    %vm65 = vcmp.eq.s32.totalorder %v30, %v57
    %vm66 = vcmp.eq.s32.totalorder %v31, %v57
    %vm67 = vcmp.eq.s32.totalorder %v32, %v57
    %vm68 = vcmp.eq.s32.totalorder %v33, %v57
    %vm69 = vcmp.eq.s32.totalorder %v34, %v57
    %vm70 = vcmp.eq.s32.totalorder %v35, %v57
    %vm71 = vcmp.eq.s32.totalorder %v36, %v57
    %vm72 = vcmp.eq.s32.totalorder %v37, %v57
    %vm73 = vcmp.eq.s32.totalorder %v38, %v57
    %vm74 = vmor %vm41, %vm58
    %vm75 = vmor %vm42, %vm59
    %vm76 = vmor %vm43, %vm60
    %vm77 = vmor %vm44, %vm61
    %vm78 = vmor %vm45, %vm62
    %vm79 = vmor %vm46, %vm63
    %vm80 = vmor %vm47, %vm64
    %vm81 = vmor %vm48, %vm65
    %vm82 = vmor %vm49, %vm66
    %vm83 = vmor %vm50, %vm67
    %vm84 = vmor %vm51, %vm68
    %vm85 = vmor %vm52, %vm69
    %vm86 = vmor %vm53, %vm70
    %vm87 = vmor %vm54, %vm71
    %vm88 = vmor %vm55, %vm72
    %vm89 = vmor %vm56, %vm73
    %v90 = vadd.s32 %v40, 64
    %vm91 = vcmp.eq.s32.totalorder %v23, %v90
    %vm92 = vcmp.eq.s32.totalorder %v24, %v90
    %vm93 = vcmp.eq.s32.totalorder %v25, %v90
    %vm94 = vcmp.eq.s32.totalorder %v26, %v90
    %vm95 = vcmp.eq.s32.totalorder %v27, %v90
    %vm96 = vcmp.eq.s32.totalorder %v28, %v90
    %vm97 = vcmp.eq.s32.totalorder %v29, %v90
    %vm98 = vcmp.eq.s32.totalorder %v30, %v90
    %vm99 = vcmp.eq.s32.totalorder %v31, %v90
    %vm100 = vcmp.eq.s32.totalorder %v32, %v90
    %vm101 = vcmp.eq.s32.totalorder %v33, %v90
    %vm102 = vcmp.eq.s32.totalorder %v34, %v90
    %vm103 = vcmp.eq.s32.totalorder %v35, %v90
    %vm104 = vcmp.eq.s32.totalorder %v36, %v90
    %vm105 = vcmp.eq.s32.totalorder %v37, %v90
    %vm106 = vcmp.eq.s32.totalorder %v38, %v90
    %vm107 = vmor %vm74, %vm91
    %vm108 = vmor %vm75, %vm92
    %vm109 = vmor %vm76, %vm93
    %vm110 = vmor %vm77, %vm94
    %vm111 = vmor %vm78, %vm95
    %vm112 = vmor %vm79, %vm96
    %vm113 = vmor %vm80, %vm97
    %vm114 = vmor %vm81, %vm98
    %vm115 = vmor %vm82, %vm99
    %vm116 = vmor %vm83, %vm100
    %vm117 = vmor %vm84, %vm101
    %vm118 = vmor %vm85, %vm102
    %vm119 = vmor %vm86, %vm103
    %vm120 = vmor %vm87, %vm104
    %vm121 = vmor %vm88, %vm105
    %vm122 = vmor %vm89, %vm106
    %v123 = vadd.s32 %v40, 96
    %vm124 = vcmp.eq.s32.totalorder %v23, %v123
    %vm125 = vcmp.eq.s32.totalorder %v24, %v123
    %vm126 = vcmp.eq.s32.totalorder %v25, %v123
    %vm127 = vcmp.eq.s32.totalorder %v26, %v123
    %vm128 = vcmp.eq.s32.totalorder %v27, %v123
    %vm129 = vcmp.eq.s32.totalorder %v28, %v123
    %vm130 = vcmp.eq.s32.totalorder %v29, %v123
    %vm131 = vcmp.eq.s32.totalorder %v30, %v123
    %vm132 = vcmp.eq.s32.totalorder %v31, %v123
    %vm133 = vcmp.eq.s32.totalorder %v32, %v123
    %vm134 = vcmp.eq.s32.totalorder %v33, %v123
    %vm135 = vcmp.eq.s32.totalorder %v34, %v123
    %vm136 = vcmp.eq.s32.totalorder %v35, %v123
    %vm137 = vcmp.eq.s32.totalorder %v36, %v123
    %vm138 = vcmp.eq.s32.totalorder %v37, %v123
    %vm139 = vcmp.eq.s32.totalorder %v38, %v123
    %vm140 = vmor %vm107, %vm124
    %vm141 = vmor %vm108, %vm125
    %vm142 = vmor %vm109, %vm126
    %vm143 = vmor %vm110, %vm127
    %vm144 = vmor %vm111, %vm128
    %vm145 = vmor %vm112, %vm129
    %vm146 = vmor %vm113, %vm130
    %vm147 = vmor %vm114, %vm131
    %vm148 = vmor %vm115, %vm132
    %vm149 = vmor %vm116, %vm133
    %vm150 = vmor %vm117, %vm134
    %vm151 = vmor %vm118, %vm135
    %vm152 = vmor %vm119, %vm136
    %vm153 = vmor %vm120, %vm137
    %vm154 = vmor %vm121, %vm138
    %vm155 = vmor %vm122, %vm139
    %v156 = vsel %vm140, 1, 0
    %v157 = vsel %vm141, 1, 0
    %v158 = vsel %vm142, 1, 0
    %v159 = vsel %vm143, 1, 0
    %v160 = vsel %vm144, 1, 0
    %v161 = vsel %vm145, 1, 0
    %v162 = vsel %vm146, 1, 0
    %v163 = vsel %vm147, 1, 0
    %v164 = vsel %vm148, 1, 0
    %v165 = vsel %vm149, 1, 0
    %v166 = vsel %vm150, 1, 0
    %v167 = vsel %vm151, 1, 0
    %v168 = vsel %vm152, 1, 0
    %v169 = vsel %vm153, 1, 0
    %v170 = vsel %vm154, 1, 0
    %v171 = vsel %vm155, 1, 0
    %v172 = vcvt.s32.f32 %v156
    %v173 = vcvt.s32.f32 %v157
    %v174 = vcvt.s32.f32 %v158
    %v175 = vcvt.s32.f32 %v159
    %v176 = vcvt.s32.f32 %v160
    %v177 = vcvt.s32.f32 %v161
    %v178 = vcvt.s32.f32 %v162
    %v179 = vcvt.s32.f32 %v163
    %v180 = vcvt.s32.f32 %v164
    %v181 = vcvt.s32.f32 %v165
    %v182 = vcvt.s32.f32 %v166
    %v183 = vcvt.s32.f32 %v167
    %v184 = vcvt.s32.f32 %v168
    %v185 = vcvt.s32.f32 %v169
    %v186 = vcvt.s32.f32 %v170
    %v187 = vcvt.s32.f32 %v171
    %188 = vmatprep.subr.mxu0 0.0
    %189 = vmatpush1.msra.mxu0 %v172
    %190 = vmatprep.subr.mxu0 0.0
    %191 = vmatpush1.msra.mxu0 %v173
    %192 = vmatprep.subr.mxu0 0.0
    %193 = vmatpush1.msra.mxu0 %v174
    %194 = vmatprep.subr.mxu0 0.0
    %195 = vmatpush1.msra.mxu0 %v175
    %196 = vmatprep.subr.mxu0 0.0
    %197 = vmatpush1.msra.mxu0 %v176
    %198 = vmatprep.subr.mxu0 0.0
    %199 = vmatpush1.msra.mxu0 %v177
    %200 = vmatprep.subr.mxu0 0.0
    %201 = vmatpush1.msra.mxu0 %v178
    %202 = vmatprep.subr.mxu0 0.0
    %203 = vmatpush1.msra.mxu0 %v179
    %204 = vmatprep.subr.mxu0 0.0
    %205 = vmatpush1.msra.mxu0 %v180
    %206 = vmatprep.subr.mxu0 0.0
    %207 = vmatpush1.msra.mxu0 %v181
    %208 = vmatprep.subr.mxu0 0.0
    %209 = vmatpush1.msra.mxu0 %v182
    %210 = vmatprep.subr.mxu0 0.0
    %211 = vmatpush1.msra.mxu0 %v183
    %212 = vmatprep.subr.mxu0 0.0
    %213 = vmatpush1.msra.mxu0 %v184
    %214 = vmatprep.subr.mxu0 0.0
    %215 = vmatpush1.msra.mxu0 %v185
    %216 = vmatprep.subr.mxu0 0.0
    %217 = vmatpush1.msra.mxu0 %v186
    %218 = vmatprep.subr.mxu0 0.0
    %219 = vmatpush1.msra.mxu0 %v187
    %220 = vmatprep.subr.mxu0 0.0
    %221 = vmatpush1.msra.mxu0 0.0
    %222 = vmatprep.subr.mxu0 0.0
    %223 = vmatpush1.msra.mxu0 0.0
    %224 = vmatprep.subr.mxu0 0.0
    %225 = vmatpush1.msra.mxu0 0.0
    %226 = vmatprep.subr.mxu0 0.0
    %227 = vmatpush1.msra.mxu0 0.0
    %228 = vmatprep.subr.mxu0 0.0
    %229 = vmatpush1.msra.mxu0 0.0
    %230 = vmatprep.subr.mxu0 0.0
    %231 = vmatpush1.msra.mxu0 0.0
    %232 = vmatprep.subr.mxu0 0.0
    %233 = vmatpush1.msra.mxu0 0.0
    %234 = vmatprep.subr.mxu0 0.0
    %235 = vmatpush1.msra.mxu0 0.0
    %236 = vmatprep.subr.mxu0 0.0
    %237 = vmatpush1.msra.mxu0 0.0
    %238 = vmatprep.subr.mxu0 0.0
    %239 = vmatpush1.msra.mxu0 0.0
    %240 = vmatprep.subr.mxu0 0.0
    %241 = vmatpush1.msra.mxu0 0.0
    %242 = vmatprep.subr.mxu0 0.0
    %243 = vmatpush1.msra.mxu0 0.0
    %244 = vmatprep.subr.mxu0 0.0
    %245 = vmatpush1.msra.mxu0 0.0
    %246 = vmatprep.subr.mxu0 0.0
    %247 = vmatpush1.msra.mxu0 0.0
    %248 = vmatprep.subr.mxu0 0.0
    %249 = vmatpush1.msra.mxu0 0.0
    %250 = vmatprep.subr.mxu0 0.0
    %251 = vmatpush1.msra.mxu0 0.0
    %252 = vmatprep.mubr.f32.mxu0 0.0
    %253 = vmatmul.mubr.f32.gmra.mrb[0].mxu0 %v21
    %v254 = vpop.f32.mrb[0].mxu0
    %v255 = vadd.f32 0.0, %v254
    %v256 = vpop.f32.mrb[0].mxu0
    %257 = vdwg.mxu0
    %v258 = vmul.f32 %v255, %v255
    %vm259 = vcmask 261120
    %v261 = vsel %vm259, 1.0, 0
    %v264 = vsel %vm259, %v258, 0
    %266 = vmatprep.subr.mxu0 0.0
    %267 = vmatpush1.xpose.msra.mxu0 %v264
    %268 = vmatprep.subr.mxu0 0.0
    %269 = vmatpush1.xpose.msra.mxu0 0.0
    %270 = vmatprep.subr.mxu0 0.0
    %271 = vmatpush1.xpose.msra.mxu0 0.0
    %272 = vmatprep.subr.mxu0 0.0
    %273 = vmatpush1.xpose.msra.mxu0 0.0
    %274 = vmatprep.subr.mxu0 0.0
    %275 = vmatpush1.xpose.msra.mxu0 0.0
    %276 = vmatprep.subr.mxu0 0.0
    %277 = vmatpush1.xpose.msra.mxu0 0.0
    %278 = vmatprep.subr.mxu0 0.0
    %279 = vmatpush1.xpose.msra.mxu0 0.0
    %280 = vmatprep.subr.mxu0 0.0
    %281 = vmatpush1.xpose.msra.mxu0 0.0
    %282 = vmatprep.subr.mxu0 0.0
    %283 = vmatpush1.xpose.msra.mxu0 0.0
    %284 = vmatprep.subr.mxu0 0.0
    %285 = vmatpush1.xpose.msra.mxu0 0.0
    %286 = vmatprep.subr.mxu0 0.0
    %287 = vmatpush1.xpose.msra.mxu0 0.0
    %288 = vmatprep.subr.mxu0 0.0
    %289 = vmatpush1.xpose.msra.mxu0 0.0
    %290 = vmatprep.subr.mxu0 0.0
    %291 = vmatpush1.xpose.msra.mxu0 0.0
    %292 = vmatprep.subr.mxu0 0.0
    %293 = vmatpush1.xpose.msra.mxu0 0.0
    %294 = vmatprep.subr.mxu0 0.0
    %295 = vmatpush1.xpose.msra.mxu0 0.0
    %296 = vmatprep.subr.mxu0 0.0
    %297 = vmatpush1.xpose.msra.mxu0 0.0
    %298 = vmatprep.subr.mxu0 0.0
    %299 = vmatpush1.xpose.msra.mxu0 0.0
    %300 = vmatprep.subr.mxu0 0.0
    %301 = vmatpush1.xpose.msra.mxu0 0.0
    %302 = vmatprep.subr.mxu0 0.0
    %303 = vmatpush1.xpose.msra.mxu0 0.0
    %304 = vmatprep.subr.mxu0 0.0
    %305 = vmatpush1.xpose.msra.mxu0 0.0
    %306 = vmatprep.subr.mxu0 0.0
    %307 = vmatpush1.xpose.msra.mxu0 0.0
    %308 = vmatprep.subr.mxu0 0.0
    %309 = vmatpush1.xpose.msra.mxu0 0.0
    %310 = vmatprep.subr.mxu0 0.0
    %311 = vmatpush1.xpose.msra.mxu0 0.0
    %312 = vmatprep.subr.mxu0 0.0
    %313 = vmatpush1.xpose.msra.mxu0 0.0
    %314 = vmatprep.subr.mxu0 0.0
    %315 = vmatpush1.xpose.msra.mxu0 0.0
    %316 = vmatprep.subr.mxu0 0.0
    %317 = vmatpush1.xpose.msra.mxu0 0.0
    %318 = vmatprep.subr.mxu0 0.0
    %319 = vmatpush1.xpose.msra.mxu0 0.0
    %320 = vmatprep.subr.mxu0 0.0
    %321 = vmatpush1.xpose.msra.mxu0 0.0
    %322 = vmatprep.subr.mxu0 0.0
    %323 = vmatpush1.xpose.msra.mxu0 0.0
    %324 = vmatprep.subr.mxu0 0.0
    %325 = vmatpush1.xpose.msra.mxu0 0.0
    %326 = vmatprep.subr.mxu0 0.0
    %327 = vmatpush1.xpose.msra.mxu0 0.0
    %328 = vmatprep.subr.mxu0 0.0
    %329 = vmatpush1.xpose.msra.mxu0 0.0
    %330 = vmatprep.mubr.f32.mxu0 0.0
    %331 = vmatmul.mubr.f32.gmra.mrb[0].mxu0 %v261
    %v332 = vpop.f32.mrb[0].mxu0
    %v333 = vadd.f32 0.0, %v332
    %v334 = vpop.f32.mrb[0].mxu0
    %335 = vdwg.mxu0
    %v336 = vmul.f32 %v21, %v21
    %337 = vmatprep.subr.mxu0 0.0
    %338 = vmatpush1.xpose.msra.mxu0 %v336
    %339 = vmatprep.subr.mxu0 0.0
    %340 = vmatpush1.xpose.msra.mxu0 0.0
    %341 = vmatprep.subr.mxu0 0.0
    %342 = vmatpush1.xpose.msra.mxu0 0.0
    %343 = vmatprep.subr.mxu0 0.0
    %344 = vmatpush1.xpose.msra.mxu0 0.0
    %345 = vmatprep.subr.mxu0 0.0
    %346 = vmatpush1.xpose.msra.mxu0 0.0
    %347 = vmatprep.subr.mxu0 0.0
    %348 = vmatpush1.xpose.msra.mxu0 0.0
    %349 = vmatprep.subr.mxu0 0.0
    %350 = vmatpush1.xpose.msra.mxu0 0.0
    %351 = vmatprep.subr.mxu0 0.0
    %352 = vmatpush1.xpose.msra.mxu0 0.0
    %353 = vmatprep.subr.mxu0 0.0
    %354 = vmatpush1.xpose.msra.mxu0 0.0
    %355 = vmatprep.subr.mxu0 0.0
    %356 = vmatpush1.xpose.msra.mxu0 0.0
    %357 = vmatprep.subr.mxu0 0.0
    %358 = vmatpush1.xpose.msra.mxu0 0.0
    %359 = vmatprep.subr.mxu0 0.0
    %360 = vmatpush1.xpose.msra.mxu0 0.0
    %361 = vmatprep.subr.mxu0 0.0
    %362 = vmatpush1.xpose.msra.mxu0 0.0
    %363 = vmatprep.subr.mxu0 0.0
    %364 = vmatpush1.xpose.msra.mxu0 0.0
    %365 = vmatprep.subr.mxu0 0.0
    %366 = vmatpush1.xpose.msra.mxu0 0.0
    %367 = vmatprep.subr.mxu0 0.0
    %368 = vmatpush1.xpose.msra.mxu0 0.0
    %369 = vmatprep.subr.mxu0 0.0
    %370 = vmatpush1.xpose.msra.mxu0 0.0
    %371 = vmatprep.subr.mxu0 0.0
    %372 = vmatpush1.xpose.msra.mxu0 0.0
    %373 = vmatprep.subr.mxu0 0.0
    %374 = vmatpush1.xpose.msra.mxu0 0.0
    %375 = vmatprep.subr.mxu0 0.0
    %376 = vmatpush1.xpose.msra.mxu0 0.0
    %377 = vmatprep.subr.mxu0 0.0
    %378 = vmatpush1.xpose.msra.mxu0 0.0
    %379 = vmatprep.subr.mxu0 0.0
    %380 = vmatpush1.xpose.msra.mxu0 0.0
    %381 = vmatprep.subr.mxu0 0.0
    %382 = vmatpush1.xpose.msra.mxu0 0.0
    %383 = vmatprep.subr.mxu0 0.0
    %384 = vmatpush1.xpose.msra.mxu0 0.0
    %385 = vmatprep.subr.mxu0 0.0
    %386 = vmatpush1.xpose.msra.mxu0 0.0
    %387 = vmatprep.subr.mxu0 0.0
    %388 = vmatpush1.xpose.msra.mxu0 0.0
    %389 = vmatprep.subr.mxu0 0.0
    %390 = vmatpush1.xpose.msra.mxu0 0.0
    %391 = vmatprep.subr.mxu0 0.0
    %392 = vmatpush1.xpose.msra.mxu0 0.0
    %393 = vmatprep.subr.mxu0 0.0
    %394 = vmatpush1.xpose.msra.mxu0 0.0
    %395 = vmatprep.subr.mxu0 0.0
    %396 = vmatpush1.xpose.msra.mxu0 0.0
    %397 = vmatprep.subr.mxu0 0.0
    %398 = vmatpush1.xpose.msra.mxu0 0.0
    %399 = vmatprep.subr.mxu0 0.0
    %400 = vmatpush1.xpose.msra.mxu0 0.0
    %401 = vmatprep.mubr.f32.mxu0 0.0
    %402 = vmatmul.mubr.f32.gmra.mrb[0].mxu0 1.0
    %v403 = vpop.f32.mrb[0].mxu0
    %v404 = vadd.f32 0.0, %v403
    %v405 = vpop.f32.mrb[0].mxu0
    %406 = vdwg.mxu0
    %v407 = vsub.f32 %v333, %v404
    %v408 = vmul.f32 %v407, 0.5
    %vm409 = vcmask 57344
    %410 = vst.msk [vmem:[#allocation5] sm:$0x1] %vm409, %v408
    // Predicated region
    $region10: #{tpu_custom_call.1} parent=1 // pred_check
      _
    $region11: #{tpu_custom_call.1} parent=1 // pred_check_branch
      %412 = sbr.rel (0) target = $region13
    $region12: #{tpu_custom_call.1} parent=1 // pred_region
      %s414 = ssub.s32 16, 16
      %415 = vsyncadd [#allocation4], %s414
      %s417 = sshll.u32 [#allocation5], 4
      %s418 = int_to_ptr.vmem [resolvable:$true] %s417
      %420 = dma.vmem_to_hbm [thread:$0]  %s418, 16, %s1, [#allocation4]
    $region13: #{tpu_custom_call.1} parent=1 // pred_fallthru
      _
    // Predicated region
    $region14: #{tpu_custom_call.1} parent=1 // pred_check
      _
    $region15: #{tpu_custom_call.1} parent=1 // pred_check_branch
      %422 = sbr.rel (0) target = $region17
    $region16: #{tpu_custom_call.1} parent=1 // pred_region
      %423 = dma.done [#allocation4], 16
    $region17: #{tpu_custom_call.1} parent=1 // pred_fallthru
      _
    %424 = vsyncpa [#allocation3], 1
    %425 = vsyncpa [#allocation4], 1

</llo_original>
